<compile_context>
chip_gen: v7x
topology: tpu7x:2x2x1
jax: 0.10.0
libtpu: 0.0.40
codegen_flags: <defaults>
</compile_context>

<pallas_src>
import functools

import jax
import jax.numpy as jnp
from jax import lax
from jax.experimental import pallas as pl
from jax.experimental.pallas import tpu as pltpu


def _ce_loss_kernel(x_ref, t_ref, out_ref, m_ref, l_ref, tx_ref, st_ref,
                    *, num_rows, block_rows):
    """One (TB, TC) tile of the streaming cross-entropy reduction."""
    j = pl.program_id(1)

    @pl.when(j == 0)
    def _init():
        m_ref[...] = jnp.full_like(m_ref, -jnp.inf)
        l_ref[...] = jnp.zeros_like(l_ref)
        tx_ref[...] = jnp.zeros_like(tx_ref)
        st_ref[...] = jnp.zeros_like(st_ref)

    x = x_ref[...].astype(jnp.float32)          # (TB, TC) logits tile
    t = t_ref[...].astype(jnp.float32)          # (TB, TC) targets tile

    # Online logsumexp over the class axis.  (Mean-centering from the PyTorch
    # reference is omitted: log_softmax is shift-invariant.)
    m_prev = m_ref[...]
    m_new = jnp.maximum(m_prev, jnp.max(x, axis=-1, keepdims=True))
    l_ref[...] = (l_ref[...] * jnp.exp(m_prev - m_new)
                  + jnp.sum(jnp.exp(x - m_new), axis=-1, keepdims=True))
    m_ref[...] = m_new

    # Streaming sums needed for loss_row = lse * sum(t) - sum(t * x).
    tx_ref[...] += jnp.sum(t * x, axis=-1, keepdims=True)
    st_ref[...] += jnp.sum(t, axis=-1, keepdims=True)

    @pl.when(j == pl.num_programs(1) - 1)
    def _finalize():
        lse = m_ref[...] + jnp.log(l_ref[...])
        row_loss = lse * st_ref[...] - tx_ref[...]        # (TB, 1)
        if num_rows % block_rows != 0:
            # Last row block extends past B: mask tail rows (their buffer
            # contents are whatever the boundary-clamped DMA left behind).
            row_ids = (pl.program_id(0) * block_rows
                       + lax.broadcasted_iota(jnp.int32, row_loss.shape, 0))
            row_loss = jnp.where(row_ids < num_rows, row_loss, 0.0)
        partial = jnp.sum(row_loss)
        # Lane-dense (1, 128) store of this row-tile's partial sum.
        out_ref[...] = jnp.full(out_ref.shape, partial, dtype=out_ref.dtype)


def _round_up(x, m):
    return (x + m - 1) // m * m


def _choose_tiles(B, C, x_itemsize, t_itemsize):
    """Pick (tb, tc, vmem_limit_bytes) from an explicit per-chip VMEM budget."""
    try:
        vmem_cap = int(pltpu.get_tpu_info().vmem_capacity_bytes)
    except Exception:
        vmem_cap = 64 * 1024 * 1024                 # conservative (v7x) fallback
    budget = (3 * vmem_cap) // 4                     # ~75% of physical VMEM

    # Per-element VMEM cost of one grid step: 2x double-buffered input tiles
    # in their native dtypes plus ~4 f32 intermediates (x, t up-casts,
    # exp(x - m), t * x).
    per_elem = 2 * (x_itemsize + t_itemsize) + 4 * 4

    # Class-axis tile: keep C whole when a reasonable row tile still fits;
    # otherwise stream it in 128-multiple chunks that divide C exactly (so no
    # lane masking is needed).  Non-128-multiple C is never split.
    tb_floor = 256
    tc = C
    if C % 128 == 0 and C * per_elem * tb_floor > budget:
        ncol = C // 128
        for d in range(ncol, 0, -1):
            if ncol % d == 0 and (d * 128) * per_elem * tb_floor <= budget:
                tc = d * 128
                break

    # Row-axis tile from the remaining budget; keep per-step input bytes large
    # (multi-MiB) for small C, but never bigger than the (padded-up) batch.
    tb = max(8, (budget // (per_elem * tc)) // 8 * 8)
    tb = min(tb, _round_up(B, 8))
    if B >= 16:
        # Ensure >= 2 row tiles so both v7x TensorCores get work.
        tb = min(tb, _round_up(-(-B // 2), 8))
    tb = max(8, (tb // 8) * 8)
    return tb, tc, budget


def ce_loss(inputs, targets):
    """inputs, targets: (B, C).  Returns scalar f32 = -sum(targets * log_softmax(inputs))."""
    assert inputs.shape == targets.shape and inputs.ndim == 2
    B, C = inputs.shape

    tb, tc, vmem_limit = _choose_tiles(B, C, inputs.dtype.itemsize,
                                       targets.dtype.itemsize)
    row_tiles = -(-B // tb)        # no host-side pad: tail rows masked in-kernel
    col_tiles = -(-C // tc)        # tc divides C (or equals it) by construction

    kernel = functools.partial(_ce_loss_kernel, num_rows=B, block_rows=tb)

    cost = pl.CostEstimate(
        flops=6 * B * C,
        transcendentals=B * C + B,                       # exp / elem + log / row
        bytes_accessed=B * C * (inputs.dtype.itemsize + targets.dtype.itemsize)
        + row_tiles * 128 * 4,
    )

    partials = pl.pallas_call(
        kernel,
        out_shape=jax.ShapeDtypeStruct((row_tiles, 1, 128), jnp.float32),
        grid=(row_tiles, col_tiles),
        in_specs=[
            pl.BlockSpec((tb, tc), lambda i, j: (i, j)),   # logits tile
            pl.BlockSpec((tb, tc), lambda i, j: (i, j)),   # targets tile
        ],
        out_specs=pl.BlockSpec((1, 1, 128), lambda i, j: (i, 0, 0)),
        scratch_shapes=[
            pltpu.VMEM((tb, 1), jnp.float32),   # running row max m
            pltpu.VMEM((tb, 1), jnp.float32),   # running sum of exp l
            pltpu.VMEM((tb, 1), jnp.float32),   # running sum(t * x)
            pltpu.VMEM((tb, 1), jnp.float32),   # running sum(t)
        ],
        compiler_params=pltpu.CompilerParams(
            dimension_semantics=("parallel", "arbitrary"),
            vmem_limit_bytes=int(vmem_limit),
        ),
        cost_estimate=cost,
    )(inputs, targets)

    # Tiny final reduction over per-row-tile partials.
    return jnp.sum(partials[:, 0, 0])


# TODO(synk): optionally accept int32 labels (instead of dense one-hot targets)
# to halve HBM traffic; kept dense here to preserve the module's soft-target
# semantics (-sum(targets * logp) for arbitrary dense targets).


if __name__ == "__main__":
    # Small deterministic example: batch=8, classes=128 (lane-dense last dim).
    B, C = 8, 128
    key = jax.random.PRNGKey(0)
    k_logits, k_labels = jax.random.split(key)

    logits = jax.random.normal(k_logits, (B, C), dtype=jnp.float32)
    labels = jax.random.randint(k_labels, (B,), 0, C)
    targets = jax.nn.one_hot(labels, C, dtype=jnp.float32)

    loss = jax.block_until_ready(ce_loss(logits, targets))

    # Pure-JAX reference of the PyTorch module.
    v = logits - jnp.mean(logits, axis=1, keepdims=True)
    ref = -jnp.sum(targets * jax.nn.log_softmax(v, axis=1))

    assert loss.shape == () and bool(jnp.isfinite(loss))
    assert jnp.allclose(loss, ref, rtol=1e-5, atol=1e-5), (loss, ref)
    print("KERNEL_OK")
</pallas_src>

<mosaic_0001>
module attributes {stable_mosaic.version = 11 : i64} {
  func.func @_ce_loss_kernel(%arg0: i32, %arg1: i32, %arg2: memref<8x128xf32, #tpu.memory_space<vmem>>, %arg3: memref<8x128xf32, #tpu.memory_space<vmem>>, %arg4: memref<1x1x128xf32, #tpu.memory_space<vmem>>, %arg5: memref<8x1xf32, #tpu.memory_space<vmem>>, %arg6: memref<8x1xf32, #tpu.memory_space<vmem>>, %arg7: memref<8x1xf32, #tpu.memory_space<vmem>>, %arg8: memref<8x1xf32, #tpu.memory_space<vmem>>) attributes {dimension_semantics = [#tpu.dimension_semantics<parallel>, #tpu.dimension_semantics<arbitrary>], iteration_bounds = array<i64: 1, 1>, scalar_prefetch = 0 : i64, scratch_operands = 4 : i64, tpu.core_type = #tpu.core_type<tc>, window_params = [{transform_indices = @transform_0, window_bounds = array<i64: 8, 128>}, {transform_indices = @transform_1, window_bounds = array<i64: 8, 128>}, {transform_indices = @transform_2, window_bounds = array<i64: 1, 1, 128>}]} {
    %c0_i32 = arith.constant 0 : i32
    %0 = arith.cmpi eq, %arg1, %c0_i32 : i32
    %1 = arith.extui %0 : i1 to i32
    %c0_i32_0 = arith.constant 0 : i32
    %2 = arith.cmpi ne, %1, %c0_i32_0 : i32
    scf.if %2 {
      %cst_25 = arith.constant 0xFF800000 : f32
      %35 = vector.broadcast %cst_25 : f32 to vector<8x1xf32>
      %c0_26 = arith.constant 0 : index
      %c0_27 = arith.constant 0 : index
      %36 = vector.load %arg5[%c0_26, %c0_27] : memref<8x1xf32, #tpu.memory_space<vmem>>, vector<8x1xf32>
      tpu.vector_store %arg5[%c0_26, %c0_27], %35 {strides = array<i32>} : memref<8x1xf32, #tpu.memory_space<vmem>>, vector<8x1xf32>,
      %cst_28 = arith.constant 0.000000e+00 : f32
      %37 = vector.broadcast %cst_28 : f32 to vector<8x1xf32>
      %c0_29 = arith.constant 0 : index
      %c0_30 = arith.constant 0 : index
      %38 = vector.load %arg6[%c0_29, %c0_30] : memref<8x1xf32, #tpu.memory_space<vmem>>, vector<8x1xf32>
      tpu.vector_store %arg6[%c0_29, %c0_30], %37 {strides = array<i32>} : memref<8x1xf32, #tpu.memory_space<vmem>>, vector<8x1xf32>,
      %cst_31 = arith.constant 0.000000e+00 : f32
      %39 = vector.broadcast %cst_31 : f32 to vector<8x1xf32>
      %c0_32 = arith.constant 0 : index
      %c0_33 = arith.constant 0 : index
      %40 = vector.load %arg7[%c0_32, %c0_33] : memref<8x1xf32, #tpu.memory_space<vmem>>, vector<8x1xf32>
      tpu.vector_store %arg7[%c0_32, %c0_33], %39 {strides = array<i32>} : memref<8x1xf32, #tpu.memory_space<vmem>>, vector<8x1xf32>,
      %cst_34 = arith.constant 0.000000e+00 : f32
      %41 = vector.broadcast %cst_34 : f32 to vector<8x1xf32>
      %c0_35 = arith.constant 0 : index
      %c0_36 = arith.constant 0 : index
      %42 = vector.load %arg8[%c0_35, %c0_36] : memref<8x1xf32, #tpu.memory_space<vmem>>, vector<8x1xf32>
      tpu.vector_store %arg8[%c0_35, %c0_36], %41 {strides = array<i32>} : memref<8x1xf32, #tpu.memory_space<vmem>>, vector<8x1xf32>,
    } else {
    }
    %c0 = arith.constant 0 : index
    %c0_1 = arith.constant 0 : index
    %3 = vector.load %arg2[%c0, %c0_1] : memref<8x128xf32, #tpu.memory_space<vmem>>, vector<8x128xf32>
    %c0_2 = arith.constant 0 : index
    %c0_3 = arith.constant 0 : index
    %4 = vector.load %arg3[%c0_2, %c0_3] : memref<8x128xf32, #tpu.memory_space<vmem>>, vector<8x128xf32>
    %c0_4 = arith.constant 0 : index
    %c0_5 = arith.constant 0 : index
    %5 = vector.load %arg5[%c0_4, %c0_5] : memref<8x1xf32, #tpu.memory_space<vmem>>, vector<8x1xf32>
    %cst = arith.constant dense<0xFF800000> : vector<8xf32>
    %6 = vector.multi_reduction <maximumf>, %3, %cst [1] : vector<8x128xf32> to vector<8xf32>
    %7 = vector.shape_cast %6 : vector<8xf32> to vector<8x1xf32>
    %8 = arith.maximumf %5, %7 : vector<8x1xf32>
    %c0_6 = arith.constant 0 : index
    %c0_7 = arith.constant 0 : index
    %9 = vector.load %arg6[%c0_6, %c0_7] : memref<8x1xf32, #tpu.memory_space<vmem>>, vector<8x1xf32>
    %10 = arith.subf %5, %8 : vector<8x1xf32>
    %11 = math.exp %10 : vector<8x1xf32>
    %12 = arith.mulf %9, %11 : vector<8x1xf32>
    %13 = vector.broadcast %8 : vector<8x1xf32> to vector<8x128xf32>
    %14 = arith.subf %3, %13 : vector<8x128xf32>
    %15 = math.exp %14 : vector<8x128xf32>
    %cst_8 = arith.constant dense<0.000000e+00> : vector<8xf32>
    %16 = vector.multi_reduction <add>, %15, %cst_8 [1] : vector<8x128xf32> to vector<8xf32>
    %17 = vector.shape_cast %16 : vector<8xf32> to vector<8x1xf32>
    %18 = arith.addf %12, %17 : vector<8x1xf32>
    %c0_9 = arith.constant 0 : index
    %c0_10 = arith.constant 0 : index
    %19 = vector.load %arg6[%c0_9, %c0_10] : memref<8x1xf32, #tpu.memory_space<vmem>>, vector<8x1xf32>
    tpu.vector_store %arg6[%c0_9, %c0_10], %18 {strides = array<i32>} : memref<8x1xf32, #tpu.memory_space<vmem>>, vector<8x1xf32>,
    %c0_11 = arith.constant 0 : index
    %c0_12 = arith.constant 0 : index
    %20 = vector.load %arg5[%c0_11, %c0_12] : memref<8x1xf32, #tpu.memory_space<vmem>>, vector<8x1xf32>
    tpu.vector_store %arg5[%c0_11, %c0_12], %8 {strides = array<i32>} : memref<8x1xf32, #tpu.memory_space<vmem>>, vector<8x1xf32>,
    %c0_13 = arith.constant 0 : index
    %c0_14 = arith.constant 0 : index
    %21 = vector.load %arg7[%c0_13, %c0_14] : memref<8x1xf32, #tpu.memory_space<vmem>>, vector<8x1xf32>
    %22 = arith.mulf %4, %3 : vector<8x128xf32>
    %cst_15 = arith.constant dense<0.000000e+00> : vector<8xf32>
    %23 = vector.multi_reduction <add>, %22, %cst_15 [1] : vector<8x128xf32> to vector<8xf32>
    %24 = vector.shape_cast %23 : vector<8xf32> to vector<8x1xf32>
    %25 = arith.addf %21, %24 : vector<8x1xf32>
    %c0_16 = arith.constant 0 : index
    %c0_17 = arith.constant 0 : index
    %26 = vector.load %arg7[%c0_16, %c0_17] : memref<8x1xf32, #tpu.memory_space<vmem>>, vector<8x1xf32>
    tpu.vector_store %arg7[%c0_16, %c0_17], %25 {strides = array<i32>} : memref<8x1xf32, #tpu.memory_space<vmem>>, vector<8x1xf32>,
    %c0_18 = arith.constant 0 : index
    %c0_19 = arith.constant 0 : index
    %27 = vector.load %arg8[%c0_18, %c0_19] : memref<8x1xf32, #tpu.memory_space<vmem>>, vector<8x1xf32>
    %cst_20 = arith.constant dense<0.000000e+00> : vector<8xf32>
    %28 = vector.multi_reduction <add>, %4, %cst_20 [1] : vector<8x128xf32> to vector<8xf32>
    %29 = vector.shape_cast %28 : vector<8xf32> to vector<8x1xf32>
    %30 = arith.addf %27, %29 : vector<8x1xf32>
    %c0_21 = arith.constant 0 : index
    %c0_22 = arith.constant 0 : index
    %31 = vector.load %arg8[%c0_21, %c0_22] : memref<8x1xf32, #tpu.memory_space<vmem>>, vector<8x1xf32>
    tpu.vector_store %arg8[%c0_21, %c0_22], %30 {strides = array<i32>} : memref<8x1xf32, #tpu.memory_space<vmem>>, vector<8x1xf32>,
    %c0_i32_23 = arith.constant 0 : i32
    %32 = arith.cmpi eq, %arg1, %c0_i32_23 : i32
    %33 = arith.extui %32 : i1 to i32
    %c0_i32_24 = arith.constant 0 : i32
    %34 = arith.cmpi ne, %33, %c0_i32_24 : i32
    scf.if %34 {
      %c0_25 = arith.constant 0 : index
      %c0_26 = arith.constant 0 : index
      %35 = vector.load %arg5[%c0_25, %c0_26] : memref<8x1xf32, #tpu.memory_space<vmem>>, vector<8x1xf32>
      %c0_27 = arith.constant 0 : index
      %c0_28 = arith.constant 0 : index
      %36 = vector.load %arg6[%c0_27, %c0_28] : memref<8x1xf32, #tpu.memory_space<vmem>>, vector<8x1xf32>
      %37 = math.log %36 : vector<8x1xf32>
      %38 = arith.addf %35, %37 : vector<8x1xf32>
      %c0_29 = arith.constant 0 : index
      %c0_30 = arith.constant 0 : index
      %39 = vector.load %arg8[%c0_29, %c0_30] : memref<8x1xf32, #tpu.memory_space<vmem>>, vector<8x1xf32>
      %40 = arith.mulf %38, %39 : vector<8x1xf32>
      %c0_31 = arith.constant 0 : index
      %c0_32 = arith.constant 0 : index
      %41 = vector.load %arg7[%c0_31, %c0_32] : memref<8x1xf32, #tpu.memory_space<vmem>>, vector<8x1xf32>
      %42 = arith.subf %40, %41 : vector<8x1xf32>
      %43 = vector.shape_cast %42 : vector<8x1xf32> to vector<1x8x1xf32>
      %cst_33 = arith.constant dense<0.000000e+00> : vector<1xf32>
      %44 = vector.multi_reduction <add>, %43, %cst_33 [1, 2] : vector<1x8x1xf32> to vector<1xf32>
      %45 = vector.shape_cast %44 : vector<1xf32> to vector<1x1x1xf32>
      %46 = vector.extract %45[0, 0, 0] : f32 from vector<1x1x1xf32>
      %47 = vector.broadcast %46 : f32 to vector<1x1x128xf32>
      %c0_34 = arith.constant 0 : index
      %c0_35 = arith.constant 0 : index
      %c0_36 = arith.constant 0 : index
      %48 = vector.load %arg4[%c0_34, %c0_35, %c0_36] : memref<1x1x128xf32, #tpu.memory_space<vmem>>, vector<1x1x128xf32>
      tpu.vector_store %arg4[%c0_34, %c0_35, %c0_36], %47 {strides = array<i32>} : memref<1x1x128xf32, #tpu.memory_space<vmem>>, vector<1x1x128xf32>,
    } else {
    }
    return
  }
  func.func @transform_0(%arg0: i32, %arg1: i32) -> (i32, i32) {
    %c0_i32 = arith.constant 0 : i32
    return %arg0, %arg1 : i32, i32
  }
  func.func @transform_1(%arg0: i32, %arg1: i32) -> (i32, i32) {
    %c0_i32 = arith.constant 0 : i32
    return %arg0, %arg1 : i32, i32
  }
  func.func @transform_2(%arg0: i32, %arg1: i32) -> (i32, i32, i32) {
    %c0_i32 = arith.constant 0 : i32
    %c0_i32_0 = arith.constant 0 : i32
    %c0_i32_1 = arith.constant 0 : i32
    return %arg0, %c0_i32, %c0_i32_0 : i32, i32, i32
  }
}

</mosaic_0001>

<llo_original>
// kernel: tpu_custom_call.1
$region0: #{tpu_custom_call.1}
  #allocation0 [shape = 'u32[]', space=smem, size = 0x4, offset = 0x4, fixed_abs, tag = 'smem constant byte address 0x4 - core index']
  #allocation1 [shape = 'u32[144,128]{1,0:T(1,128)}', space=vmem, size = 0x12000, scoped, tag = 'internal scratch']
  #allocation2 [shape = 'f32[8,1]{1,0:T(8,128)}', space=vmem, size = 0x1000, scoped, tag = 'scratch operand']
  #allocation3 [shape = 'f32[8,1]{1,0:T(8,128)}', space=vmem, size = 0x1000, scoped, tag = 'scratch operand']
  #allocation4 [shape = 'f32[8,1]{1,0:T(8,128)}', space=vmem, size = 0x1000, scoped, tag = 'scratch operand']
  #allocation5 [shape = 'f32[8,1]{1,0:T(8,128)}', space=vmem, size = 0x1000, scoped, tag = 'scratch operand']
  %s0 = inlined_call_operand.hbm [shape: f32[8,128], index: 0, kind: input, shape index: {}]
  %s1 = inlined_call_operand.hbm [shape: f32[8,128], index: 1, kind: input, shape index: {}]
  %s2 = inlined_call_operand.hbm [shape: f32[1,1,128], index: 2, kind: output, shape index: {}]
  %s3 = sld [smem:[#allocation0]]
  $region34: #{tpu_custom_call.1} parent=0
    _
  %s5 = ssub.s32 1, %s3
  %s6 = scalar_select 0, %s5, %s3
  $region1: #{tpu_custom_call.1} parent=0
    #allocation6 [shape = 'u8[4096]{0}', space=vmem, size = 0x1000, scoped, tag = 'input window, operand 0, single buffered']
    #allocation7 [shape = 's32[1]{0}', space=sflag, size = 0x4, scoped, tag = 'scoped memory for tpu_custom_call.1']
    #allocation8 [shape = 's32[1]{0}', space=sflag, size = 0x4, scoped, tag = 'scoped memory for tpu_custom_call.1']
    #allocation9 [shape = 'u8[4096]{0}', space=vmem, size = 0x1000, scoped, tag = 'input window, operand 1, single buffered']
    #allocation10 [shape = 's32[1]{0}', space=sflag, size = 0x4, scoped, tag = 'scoped memory for tpu_custom_call.1']
    #allocation11 [shape = 'u8[512]{0}', space=vmem, size = 0x400, scoped, tag = 'output window, operand 0, single buffered']
    %7 = vsyncpa [#allocation7], 0
    %8 = vsyncpa [#allocation10], 0
    %9 = vsyncpa [#allocation8], 0
    // Predicated region
    $region2: #{tpu_custom_call.1} parent=1 // pred_check
      _
    $region3: #{tpu_custom_call.1} parent=1 // pred_check_branch
      %11 = sbr.rel (0) target = $region5
    $region4: #{tpu_custom_call.1} parent=1 // pred_region
      %s13 = ssub.s32 128, 128
      %14 = vsyncadd [#allocation7], %s13
      %s16 = sshll.u32 [#allocation6], 4
      %s17 = int_to_ptr.vmem [resolvable:$true] %s16
      %19 = dma.hbm_to_vmem [thread:$0]  %s0, 128, %s17, [#allocation7]
    $region5: #{tpu_custom_call.1} parent=1 // pred_fallthru
      _
    // Predicated region
    $region6: #{tpu_custom_call.1} parent=1 // pred_check
      _
    $region7: #{tpu_custom_call.1} parent=1 // pred_check_branch
      %21 = sbr.rel (0) target = $region9
    $region8: #{tpu_custom_call.1} parent=1 // pred_region
      %s23 = ssub.s32 128, 128
      %24 = vsyncadd [#allocation10], %s23
      %s26 = sshll.u32 [#allocation9], 4
      %s27 = int_to_ptr.vmem [resolvable:$true] %s26
      %29 = dma.hbm_to_vmem [thread:$0]  %s1, 128, %s27, [#allocation10]
    $region9: #{tpu_custom_call.1} parent=1 // pred_fallthru
      _
    // Predicated region
    $region10: #{tpu_custom_call.1} parent=1 // pred_check
      _
    $region11: #{tpu_custom_call.1} parent=1 // pred_check_branch
      %31 = sbr.rel (0) target = $region13
    $region12: #{tpu_custom_call.1} parent=1 // pred_region
      %32 = dma.done [#allocation7], 128
    $region13: #{tpu_custom_call.1} parent=1 // pred_fallthru
      _
    // Predicated region
    $region14: #{tpu_custom_call.1} parent=1 // pred_check
      _
    $region15: #{tpu_custom_call.1} parent=1 // pred_check_branch
      %34 = sbr.rel (0) target = $region17
    $region16: #{tpu_custom_call.1} parent=1 // pred_region
      %35 = dma.done [#allocation10], 128
    $region17: #{tpu_custom_call.1} parent=1 // pred_fallthru
      _
    %p36 = scmp.eq.s32.totalorder 0, 0
    // Predicated region
    $region18: #{tpu_custom_call.1} parent=1 // pred_check
      %p37 = pneg %p36
    $region19: #{tpu_custom_call.1} parent=1 // pred_check_branch
      %39 = sbr.rel (%p37) target = $region21
    $region20: #{tpu_custom_call.1} parent=1 // pred_region
      %vm40 = vcmask 7168
      %41 = vst.msk [vmem:[#allocation2] sm:$0xff] %vm40, -inf
      %42 = vst.msk [vmem:[#allocation3] sm:$0xff] %vm40, 0.0
      %43 = vst.msk [vmem:[#allocation4] sm:$0xff] %vm40, 0.0
      %44 = vst.msk [vmem:[#allocation5] sm:$0xff] %vm40, 0.0
    $region21: #{tpu_custom_call.1} parent=1 // pred_fallthru
      _
    %v45 = vld [vmem:[#allocation6] sm:$0xff]
    %v46 = vld [vmem:[#allocation9] sm:$0xff]
    %v47 = vld [vmem:[#allocation2] sm:$0xff]
    %48 = vmax.xlane.f32.xlu0 %v45
    %v49 = vpop.xlane.xlu0 %48
    %v50 = vmax.f32 %v47, %v49
    %v51 = vld [vmem:[#allocation3] sm:$0xff]
    %v52 = vsub.f32 %v47, %v50
    %v53 = vmul.f32 %v52, 1.442695
    %v54 = vpow.pop %v53
    %v55 = vmul.f32 %v51, %v54
    %57 = vset.pattern.permute.xlu0 0
    %58 = vperm.xlu0 %57, %v50
    %v59 = vpop.permute.xlu0 %58
    %v61 = vsub.f32 %v45, %v59
    %v62 = vmul.f32 %v61, 1.442695
    %v63 = vpow.pop %v62
    %64 = vadd.xlane.f32.xlu0 %v63
    %v65 = vpop.xlane.xlu0 %64
    %v66 = vadd.f32 %v55, %v65
    %vm67 = vcmask 7168
    %68 = vst.msk [vmem:[#allocation3] sm:$0xff] %vm67, %v66
    %69 = vst.msk [vmem:[#allocation2] sm:$0xff] %vm67, %v50
    %v70 = vld [vmem:[#allocation4] sm:$0xff]
    %v71 = vmul.f32 %v46, %v45
    %72 = vadd.xlane.f32.xlu0 %v71
    %v73 = vpop.xlane.xlu0 %72
    %v74 = vadd.f32 %v70, %v73
    %75 = vst.msk [vmem:[#allocation4] sm:$0xff] %vm67, %v74
    %v76 = vld [vmem:[#allocation5] sm:$0xff]
    %77 = vadd.xlane.f32.xlu0 %v46
    %v78 = vpop.xlane.xlu0 %77
    %v79 = vadd.f32 %v76, %v78
    %80 = vst.msk [vmem:[#allocation5] sm:$0xff] %vm67, %v79
    // Predicated region
    $region22: #{tpu_custom_call.1} parent=1 // pred_check
      %p81 = pneg %p36
    $region23: #{tpu_custom_call.1} parent=1 // pred_check_branch
      %83 = sbr.rel (%p81) target = $region25
    $region24: #{tpu_custom_call.1} parent=1 // pred_region
      %v84 = vld [vmem:[#allocation2] sm:$0xff]
      %v85 = vld [vmem:[#allocation3] sm:$0xff]
      %v86 = vlog2.pop %v85
      %v87 = vmul.f32 %v86, 0.6931472
      %v88 = vadd.f32 %v84, %v87
      %v89 = vld [vmem:[#allocation5] sm:$0xff]
      %v90 = vmul.f32 %v88, %v89
      %v91 = vld [vmem:[#allocation4] sm:$0xff]
      %v92 = vsub.f32 %v90, %v91
      %v93 = vsel %vm67, %v92, 0.0
      %94 = vadd.xlane.f32.xlu0 %v93
      %v95 = vpop.xlane.xlu0 %94
      %v96 = vrot.slane %v95, 4
      %v97 = vadd.f32 %v95, %v96
      %v98 = vrot.slane %v97, 2
      %v99 = vadd.f32 %v97, %v98
      %v100 = vrot.slane %v99, 1
      %v101 = vadd.f32 %v99, %v100
      %s102 = vtos %v101
      %v103 = vstv %s102
      %104 = vst [vmem:[#allocation11] sm:$0x1] %v103
    $region25: #{tpu_custom_call.1} parent=1 // pred_fallthru
      _
    // Predicated region
    $region26: #{tpu_custom_call.1} parent=1 // pred_check
      _
    $region27: #{tpu_custom_call.1} parent=1 // pred_check_branch
      %106 = sbr.rel (0) target = $region29
    $region28: #{tpu_custom_call.1} parent=1 // pred_region
      %s108 = ssub.s32 16, 16
      %109 = vsyncadd [#allocation8], %s108
      %s111 = sshll.u32 [#allocation11], 4
      %s112 = int_to_ptr.vmem [resolvable:$true] %s111
      %114 = dma.vmem_to_hbm [thread:$0]  %s112, 16, %s2, [#allocation8]
    $region29: #{tpu_custom_call.1} parent=1 // pred_fallthru
      _
    // Predicated region
    $region30: #{tpu_custom_call.1} parent=1 // pred_check
      _
    $region31: #{tpu_custom_call.1} parent=1 // pred_check_branch
      %116 = sbr.rel (0) target = $region33
    $region32: #{tpu_custom_call.1} parent=1 // pred_region
      %117 = dma.done [#allocation8], 16
    $region33: #{tpu_custom_call.1} parent=1 // pred_fallthru
      _
    %118 = vsyncpa [#allocation7], 1
    %119 = vsyncpa [#allocation10], 1
    %120 = vsyncpa [#allocation8], 1

</llo_original>
